<compile_context>
chip_gen: v7x
topology: tpu7x:2x2x1
jax: 0.10.0
libtpu: 0.0.40
codegen_flags: <defaults>
</compile_context>

<pallas_src>
import functools

import jax
import jax.numpy as jnp
from jax import lax
from jax.experimental import pallas as pl
from jax.experimental.pallas import tpu as pltpu

_LANES = 128
_ACC_ROWS = 64            # accumulator sublanes (8 vregs per accumulator)
_BLOCK_ROWS_MAX = 8192    # (8192, 128) f32 = 4 MiB per input block
_CHUNK_ROWS = 512         # in-kernel compute chunk (256 KiB temporaries)


def _cdiv(a, b):
    return (a + b - 1) // b


def _round_up(n, m):
    return ((n + m - 1) // m) * m


def _num_tensorcore_splits():
    """2-way megacore split on multi-TC chips (v4/v5p/v7x), 1 on v5e/v6e."""
    try:
        kind = jax.devices()[0].device_kind.lower()
    except Exception:
        return 1
    if "lite" in kind or "v5e" in kind or "v6e" in kind:
        return 1
    return 2


def _objective_v_kernel(v_ref, x_ref, pu_ref, sv_ref, sq_ref,
                        acc_v_ref, acc_q_ref, *,
                        lmbda, block_rows, chunk_rows, steps, n_valid, ragged):
    c = pl.program_id(0)      # megacore split ("parallel")
    i = pl.program_id(1)      # streaming / reduction axis ("arbitrary")

    @pl.when(i == 0)
    def _init():
        acc_v_ref[...] = jnp.zeros_like(acc_v_ref)
        acc_q_ref[...] = jnp.zeros_like(acc_q_ref)

    n_chunks = block_rows // chunk_rows
    block_elems = block_rows * _LANES
    # Un-clamped global element offset of this block (the input index_map may
    # clamp the DMA, but masking must use the true logical position).
    base = (c * steps + i) * block_elems

    def _accumulate(vv, rr):
        # (chunk_rows, 128) -> (chunk_rows/64, 64, 128) sum: 8 independent vreg
        # accumulation streams per accumulator, no long dependent add chain.
        acc_v_ref[...] += vv.reshape(-1, _ACC_ROWS, _LANES).sum(axis=0)
        acc_q_ref[...] += (rr * rr).reshape(-1, _ACC_ROWS, _LANES).sum(axis=0)

    def _chunk(k, carry):
        r0 = k * chunk_rows
        v = v_ref[pl.ds(r0, chunk_rows), :]
        xb = x_ref[pl.ds(r0, chunk_rows), :]
        pub = pu_ref[pl.ds(r0, chunk_rows), :]
        resid = (v - xb) - jnp.float32(lmbda) * pub     # pu / rho == lmbda * pu

        if not ragged:
            _accumulate(v, resid)
        else:
            cbase = base + r0 * _LANES
            tail = cbase + chunk_rows * _LANES > n_valid

            @pl.when(jnp.logical_not(tail))
            def _full():
                _accumulate(v, resid)

            @pl.when(tail)
            def _masked():
                row = lax.broadcasted_iota(jnp.int32, (chunk_rows, _LANES), 0)
                col = lax.broadcasted_iota(jnp.int32, (chunk_rows, _LANES), 1)
                keep = (cbase + row * _LANES + col) < n_valid
                _accumulate(jnp.where(keep, v, 0.0), jnp.where(keep, resid, 0.0))

        return carry

    lax.fori_loop(0, n_chunks, _chunk, 0)

    @pl.when(i == steps - 1)
    def _finalize():
        # The single cross-lane reduction, once per core.
        sv_ref[...] = jnp.sum(acc_v_ref[...], keepdims=True).reshape(1, 1, 1)
        sq_ref[...] = jnp.sum(acc_q_ref[...], keepdims=True).reshape(1, 1, 1)


def objective_v(v, x, pu, lmbda=100.0):
    """JAX/Pallas equivalent of ObjectiveV(lmbda).forward(v, x, pu) -> f32 scalar."""
    lmbda = float(lmbda)
    rho = 1.0 / lmbda
    B, H, W = v.shape
    n = B * H * W

    R = _cdiv(n, _LANES)                       # lane-dense rows
    if R >= _CHUNK_ROWS:
        block_rows = min(_BLOCK_ROWS_MAX, _round_up(R, _CHUNK_ROWS))
        chunk_rows = _CHUNK_ROWS
    else:
        block_rows = _round_up(R, _ACC_ROWS)
        chunk_rows = block_rows

    total_blocks = _cdiv(R, block_rows)
    num_splits = max(1, min(_num_tensorcore_splits(), total_blocks))
    steps = _cdiv(total_blocks, num_splits)
    coverage_rows = num_splits * steps * block_rows
    n_valid = R * _LANES
    ragged = coverage_rows != R                 # any in-kernel masking needed?
    clamp = num_splits * steps > total_blocks   # extra (fully-masked) block?

    if coverage_rows * _LANES >= 2 ** 31:
        raise ValueError("input too large for int32 index arithmetic in the kernel")

    def _flat(a):
        a = a.astype(jnp.float32).reshape(-1)
        if n_valid != n:                        # pad only to the next 128 multiple
            a = jnp.pad(a, (0, n_valid - n))    # zeros contribute exactly 0
        return a.reshape(R, _LANES)             # free metadata reshape when n%128==0

    vf, xf, pf = _flat(v), _flat(x), _flat(pu)

    kernel = functools.partial(
        _objective_v_kernel, lmbda=lmbda, block_rows=block_rows,
        chunk_rows=chunk_rows, steps=steps, n_valid=n_valid, ragged=ragged)

    if clamp:
        def in_map(c, i):
            return (jnp.minimum(c * steps + i, total_blocks - 1), 0)
    else:
        def in_map(c, i):
            return (c * steps + i, 0)

    grid_spec = pltpu.PrefetchScalarGridSpec(
        num_scalar_prefetch=0,
        grid=(num_splits, steps),
        in_specs=[pl.BlockSpec((block_rows, _LANES), in_map) for _ in range(3)],
        out_specs=[pl.BlockSpec((1, 1, 1), lambda c, i: (c, 0, 0)),
                   pl.BlockSpec((1, 1, 1), lambda c, i: (c, 0, 0))],
        scratch_shapes=[pltpu.VMEM((_ACC_ROWS, _LANES), jnp.float32),
                        pltpu.VMEM((_ACC_ROWS, _LANES), jnp.float32)],
    )

    part_v, part_q = pl.pallas_call(
        kernel,
        out_shape=(jax.ShapeDtypeStruct((num_splits, 1, 1), jnp.float32),
                   jax.ShapeDtypeStruct((num_splits, 1, 1), jnp.float32)),
        grid_spec=grid_spec,
        compiler_params=pltpu.CompilerParams(
            dimension_semantics=("parallel", "arbitrary"),
            vmem_limit_bytes=32 * 1024 * 1024),
        cost_estimate=pl.CostEstimate(
            flops=6 * n, transcendentals=0, bytes_accessed=3 * n * 4),
    )(vf, xf, pf)

    s_v = jnp.sum(part_v)           # sum(v) over the whole array (from kernel)
    s_q = jnp.sum(part_q)           # sum((v - x - lmbda*pu)**2)

    # O(perimeter) boundary sums for the telescoped TV term (plain JAX).
    v32 = v.astype(jnp.float32)
    row0 = jnp.sum(v32[:, 0, :])
    rowL = jnp.sum(v32[:, H - 1, :])
    col0 = jnp.sum(v32[:, :, 0])
    colL = jnp.sum(v32[:, :, W - 1])

    tv = (s_v - row0 - (H - 1) * rowL) + (colL - col0)
    return lmbda * tv + 0.5 * rho * s_q


if __name__ == "__main__":
    key = jax.random.PRNGKey(0)
    kv, kx, kp = jax.random.split(key, 3)

    B, H, W = 2, 16, 16
    v = jax.random.normal(kv, (B, H, W), dtype=jnp.float32)
    x = jax.random.normal(kx, (B, H, W), dtype=jnp.float32)
    pu = jax.random.normal(kp, (B, H, W), dtype=jnp.float32)

    lmbda = 100.0
    out = objective_v(v, x, pu, lmbda=lmbda)
    out = jax.block_until_ready(out)

    # Pure-JAX reference (mirrors the PyTorch forward exactly, including the
    # `images[:, -1:, :]` broadcast inside total_variation).
    rho = 1.0 / lmbda
    dif1 = v[:, 1:, :] - v[:, -1:, :]
    dif2 = v[:, :, 1:] - v[:, :, :-1]
    ref = lmbda * (jnp.sum(dif1) + jnp.sum(dif2)) + (rho / 2.0) * jnp.sum(
        (v - (x + pu / rho)) ** 2)

    assert jnp.allclose(out, ref, rtol=1e-4, atol=1e-1), (out, ref)
    print("KERNEL_OK")
</pallas_src>

<mosaic_0001>
module attributes {stable_mosaic.version = 11 : i64} {
  func.func @_objective_v_kernel(%arg0: i32, %arg1: i32, %arg2: memref<64x128xf32, #tpu.memory_space<vmem>>, %arg3: memref<64x128xf32, #tpu.memory_space<vmem>>, %arg4: memref<64x128xf32, #tpu.memory_space<vmem>>, %arg5: memref<1x1x1xf32, #tpu.memory_space<vmem>>, %arg6: memref<1x1x1xf32, #tpu.memory_space<vmem>>, %arg7: memref<64x128xf32, #tpu.memory_space<vmem>>, %arg8: memref<64x128xf32, #tpu.memory_space<vmem>>) attributes {dimension_semantics = [#tpu.dimension_semantics<parallel>, #tpu.dimension_semantics<arbitrary>], iteration_bounds = array<i64: 1, 1>, scalar_prefetch = 0 : i64, scratch_operands = 2 : i64, tpu.core_type = #tpu.core_type<tc>, window_params = [{transform_indices = @transform_0, window_bounds = array<i64: 64, 128>}, {transform_indices = @transform_1, window_bounds = array<i64: 64, 128>}, {transform_indices = @transform_2, window_bounds = array<i64: 64, 128>}, {transform_indices = @transform_3, window_bounds = array<i64: 1, 1, 1>}, {transform_indices = @transform_4, window_bounds = array<i64: 1, 1, 1>}]} {
    %c0_i32 = arith.constant 0 : i32
    %0 = arith.cmpi eq, %arg1, %c0_i32 : i32
    %1 = arith.extui %0 : i1 to i32
    %c0_i32_0 = arith.constant 0 : i32
    %2 = arith.cmpi ne, %1, %c0_i32_0 : i32
    scf.if %2 {
      %cst_10 = arith.constant 0.000000e+00 : f32
      %29 = vector.broadcast %cst_10 : f32 to vector<64x128xf32>
      %c0_11 = arith.constant 0 : index
      %c0_12 = arith.constant 0 : index
      %30 = vector.load %arg7[%c0_11, %c0_12] : memref<64x128xf32, #tpu.memory_space<vmem>>, vector<64x128xf32>
      tpu.vector_store %arg7[%c0_11, %c0_12], %29 {strides = array<i32>} : memref<64x128xf32, #tpu.memory_space<vmem>>, vector<64x128xf32>,
      %cst_13 = arith.constant 0.000000e+00 : f32
      %31 = vector.broadcast %cst_13 : f32 to vector<64x128xf32>
      %c0_14 = arith.constant 0 : index
      %c0_15 = arith.constant 0 : index
      %32 = vector.load %arg8[%c0_14, %c0_15] : memref<64x128xf32, #tpu.memory_space<vmem>>, vector<64x128xf32>
      tpu.vector_store %arg8[%c0_14, %c0_15], %31 {strides = array<i32>} : memref<64x128xf32, #tpu.memory_space<vmem>>, vector<64x128xf32>,
    } else {
    }
    %c1_i32 = arith.constant 1 : i32
    %3 = arith.muli %arg0, %c1_i32 : i32
    %4 = arith.addi %3, %arg1 : i32
    %c8192_i32 = arith.constant 8192 : i32
    %5 = arith.muli %4, %c8192_i32 : i32
    %c0_i32_1 = arith.constant 0 : i32
    %c64_i32 = arith.constant 64 : i32
    %6 = arith.muli %c0_i32_1, %c64_i32 : i32
    %7 = arith.index_cast %6 : i32 to index
    %c0 = arith.constant 0 : index
    %8 = vector.load %arg2[%7, %c0] : memref<64x128xf32, #tpu.memory_space<vmem>>, vector<64x128xf32>
    %9 = arith.index_cast %6 : i32 to index
    %c0_2 = arith.constant 0 : index
    %10 = vector.load %arg3[%9, %c0_2] : memref<64x128xf32, #tpu.memory_space<vmem>>, vector<64x128xf32>
    %11 = arith.index_cast %6 : i32 to index
    %c0_3 = arith.constant 0 : index
    %12 = vector.load %arg4[%11, %c0_3] : memref<64x128xf32, #tpu.memory_space<vmem>>, vector<64x128xf32>
    %13 = arith.subf %8, %10 : vector<64x128xf32>
    %cst = arith.constant 1.000000e+02 : f32
    %14 = vector.broadcast %cst : f32 to vector<64x128xf32>
    %15 = arith.mulf %14, %12 : vector<64x128xf32>
    %16 = arith.subf %13, %15 : vector<64x128xf32>
    %c128_i32 = arith.constant 128 : i32
    %17 = arith.muli %6, %c128_i32 : i32
    %18 = arith.addi %5, %17 : i32
    %c8192_i32_4 = arith.constant 8192 : i32
    %19 = arith.addi %18, %c8192_i32_4 : i32
    %c512_i32 = arith.constant 512 : i32
    %20 = arith.cmpi sgt, %19, %c512_i32 : i32
    %true = arith.constant true
    %21 = arith.xori %20, %true : i1
    %22 = arith.extui %21 : i1 to i32
    %c0_i32_5 = arith.constant 0 : i32
    %23 = arith.cmpi ne, %22, %c0_i32_5 : i32
    scf.if %23 {
      %c0_10 = arith.constant 0 : index
      %c0_11 = arith.constant 0 : index
      %29 = vector.load %arg7[%c0_10, %c0_11] : memref<64x128xf32, #tpu.memory_space<vmem>>, vector<64x128xf32>
      %30 = vector.shape_cast %8 : vector<64x128xf32> to vector<1x64x128xf32>
      %cst_12 = arith.constant dense<0.000000e+00> : vector<64x128xf32>
      %31 = vector.multi_reduction <add>, %30, %cst_12 [0] : vector<1x64x128xf32> to vector<64x128xf32>
      %32 = arith.addf %29, %31 : vector<64x128xf32>
      %c0_13 = arith.constant 0 : index
      %c0_14 = arith.constant 0 : index
      %33 = vector.load %arg7[%c0_13, %c0_14] : memref<64x128xf32, #tpu.memory_space<vmem>>, vector<64x128xf32>
      tpu.vector_store %arg7[%c0_13, %c0_14], %32 {strides = array<i32>} : memref<64x128xf32, #tpu.memory_space<vmem>>, vector<64x128xf32>,
      %c0_15 = arith.constant 0 : index
      %c0_16 = arith.constant 0 : index
      %34 = vector.load %arg8[%c0_15, %c0_16] : memref<64x128xf32, #tpu.memory_space<vmem>>, vector<64x128xf32>
      %35 = arith.mulf %16, %16 : vector<64x128xf32>
      %36 = vector.shape_cast %35 : vector<64x128xf32> to vector<1x64x128xf32>
      %cst_17 = arith.constant dense<0.000000e+00> : vector<64x128xf32>
      %37 = vector.multi_reduction <add>, %36, %cst_17 [0] : vector<1x64x128xf32> to vector<64x128xf32>
      %38 = arith.addf %34, %37 : vector<64x128xf32>
      %c0_18 = arith.constant 0 : index
      %c0_19 = arith.constant 0 : index
      %39 = vector.load %arg8[%c0_18, %c0_19] : memref<64x128xf32, #tpu.memory_space<vmem>>, vector<64x128xf32>
      tpu.vector_store %arg8[%c0_18, %c0_19], %38 {strides = array<i32>} : memref<64x128xf32, #tpu.memory_space<vmem>>, vector<64x128xf32>,
    } else {
    }
    %24 = arith.extui %20 : i1 to i32
    %c0_i32_6 = arith.constant 0 : i32
    %25 = arith.cmpi ne, %24, %c0_i32_6 : i32
    scf.if %25 {
      %29 = tpu.iota {dimensions = array<i32: 0>} : vector<64x128xi32>
      %30 = tpu.iota {dimensions = array<i32: 1>} : vector<64x128xi32>
      %c128_i32_10 = arith.constant 128 : i32
      %31 = vector.broadcast %c128_i32_10 : i32 to vector<64x128xi32>
      %32 = arith.muli %29, %31 : vector<64x128xi32>
      %33 = vector.broadcast %18 : i32 to vector<64x128xi32>
      %34 = arith.addi %33, %32 : vector<64x128xi32>
      %35 = arith.addi %34, %30 : vector<64x128xi32>
      %c512_i32_11 = arith.constant 512 : i32
      %36 = vector.broadcast %c512_i32_11 : i32 to vector<64x128xi32>
      %37 = arith.cmpi slt, %35, %36 : vector<64x128xi32>
      %cst_12 = arith.constant 0.000000e+00 : f32
      %38 = vector.broadcast %cst_12 : f32 to vector<64x128xf32>
      %39 = arith.select %37, %8, %38 : vector<64x128xi1>, vector<64x128xf32>
      %cst_13 = arith.constant 0.000000e+00 : f32
      %40 = vector.broadcast %cst_13 : f32 to vector<64x128xf32>
      %41 = arith.select %37, %16, %40 : vector<64x128xi1>, vector<64x128xf32>
      %c0_14 = arith.constant 0 : index
      %c0_15 = arith.constant 0 : index
      %42 = vector.load %arg7[%c0_14, %c0_15] : memref<64x128xf32, #tpu.memory_space<vmem>>, vector<64x128xf32>
      %43 = vector.shape_cast %39 : vector<64x128xf32> to vector<1x64x128xf32>
      %cst_16 = arith.constant dense<0.000000e+00> : vector<64x128xf32>
      %44 = vector.multi_reduction <add>, %43, %cst_16 [0] : vector<1x64x128xf32> to vector<64x128xf32>
      %45 = arith.addf %42, %44 : vector<64x128xf32>
      %c0_17 = arith.constant 0 : index
      %c0_18 = arith.constant 0 : index
      %46 = vector.load %arg7[%c0_17, %c0_18] : memref<64x128xf32, #tpu.memory_space<vmem>>, vector<64x128xf32>
      tpu.vector_store %arg7[%c0_17, %c0_18], %45 {strides = array<i32>} : memref<64x128xf32, #tpu.memory_space<vmem>>, vector<64x128xf32>,
      %c0_19 = arith.constant 0 : index
      %c0_20 = arith.constant 0 : index
      %47 = vector.load %arg8[%c0_19, %c0_20] : memref<64x128xf32, #tpu.memory_space<vmem>>, vector<64x128xf32>
      %48 = arith.mulf %41, %41 : vector<64x128xf32>
      %49 = vector.shape_cast %48 : vector<64x128xf32> to vector<1x64x128xf32>
      %cst_21 = arith.constant dense<0.000000e+00> : vector<64x128xf32>
      %50 = vector.multi_reduction <add>, %49, %cst_21 [0] : vector<1x64x128xf32> to vector<64x128xf32>
      %51 = arith.addf %47, %50 : vector<64x128xf32>
      %c0_22 = arith.constant 0 : index
      %c0_23 = arith.constant 0 : index
      %52 = vector.load %arg8[%c0_22, %c0_23] : memref<64x128xf32, #tpu.memory_space<vmem>>, vector<64x128xf32>
      tpu.vector_store %arg8[%c0_22, %c0_23], %51 {strides = array<i32>} : memref<64x128xf32, #tpu.memory_space<vmem>>, vector<64x128xf32>,
    } else {
    }
    %c1_i32_7 = arith.constant 1 : i32
    %c0_i32_8 = arith.constant 0 : i32
    %26 = arith.cmpi eq, %arg1, %c0_i32_8 : i32
    %27 = arith.extui %26 : i1 to i32
    %c0_i32_9 = arith.constant 0 : i32
    %28 = arith.cmpi ne, %27, %c0_i32_9 : i32
    scf.if %28 {
      %c0_10 = arith.constant 0 : index
      %c0_11 = arith.constant 0 : index
      %29 = vector.load %arg7[%c0_10, %c0_11] : memref<64x128xf32, #tpu.memory_space<vmem>>, vector<64x128xf32>
      %30 = vector.shape_cast %29 : vector<64x128xf32> to vector<1x64x128xf32>
      %cst_12 = arith.constant dense<0.000000e+00> : vector<1xf32>
      %31 = vector.multi_reduction <add>, %30, %cst_12 [1, 2] : vector<1x64x128xf32> to vector<1xf32>
      %32 = vector.shape_cast %31 : vector<1xf32> to vector<1x1x1xf32>
      %33 = vector.extract %32[0, 0, 0] : f32 from vector<1x1x1xf32>
      %34 = vector.broadcast %33 : f32 to vector<1x1xf32>
      %35 = vector.shape_cast %34 : vector<1x1xf32> to vector<1x1x1xf32>
      %c0_13 = arith.constant 0 : index
      %c0_14 = arith.constant 0 : index
      %c0_15 = arith.constant 0 : index
      %36 = vector.load %arg5[%c0_13, %c0_14, %c0_15] : memref<1x1x1xf32, #tpu.memory_space<vmem>>, vector<1x1x1xf32>
      tpu.vector_store %arg5[%c0_13, %c0_14, %c0_15], %35 {strides = array<i32>} : memref<1x1x1xf32, #tpu.memory_space<vmem>>, vector<1x1x1xf32>,
      %c0_16 = arith.constant 0 : index
      %c0_17 = arith.constant 0 : index
      %37 = vector.load %arg8[%c0_16, %c0_17] : memref<64x128xf32, #tpu.memory_space<vmem>>, vector<64x128xf32>
      %38 = vector.shape_cast %37 : vector<64x128xf32> to vector<1x64x128xf32>
      %cst_18 = arith.constant dense<0.000000e+00> : vector<1xf32>
      %39 = vector.multi_reduction <add>, %38, %cst_18 [1, 2] : vector<1x64x128xf32> to vector<1xf32>
      %40 = vector.shape_cast %39 : vector<1xf32> to vector<1x1x1xf32>
      %41 = vector.extract %40[0, 0, 0] : f32 from vector<1x1x1xf32>
      %42 = vector.broadcast %41 : f32 to vector<1x1xf32>
      %43 = vector.shape_cast %42 : vector<1x1xf32> to vector<1x1x1xf32>
      %c0_19 = arith.constant 0 : index
      %c0_20 = arith.constant 0 : index
      %c0_21 = arith.constant 0 : index
      %44 = vector.load %arg6[%c0_19, %c0_20, %c0_21] : memref<1x1x1xf32, #tpu.memory_space<vmem>>, vector<1x1x1xf32>
      tpu.vector_store %arg6[%c0_19, %c0_20, %c0_21], %43 {strides = array<i32>} : memref<1x1x1xf32, #tpu.memory_space<vmem>>, vector<1x1x1xf32>,
    } else {
    }
    return
  }
  func.func @transform_0(%arg0: i32, %arg1: i32) -> (i32, i32) {
    %c1_i32 = arith.constant 1 : i32
    %0 = arith.muli %arg0, %c1_i32 : i32
    %1 = arith.addi %0, %arg1 : i32
    %c0_i32 = arith.constant 0 : i32
    %c0_i32_0 = arith.constant 0 : i32
    return %1, %c0_i32 : i32, i32
  }
  func.func @transform_1(%arg0: i32, %arg1: i32) -> (i32, i32) {
    %c1_i32 = arith.constant 1 : i32
    %0 = arith.muli %arg0, %c1_i32 : i32
    %1 = arith.addi %0, %arg1 : i32
    %c0_i32 = arith.constant 0 : i32
    %c0_i32_0 = arith.constant 0 : i32
    return %1, %c0_i32 : i32, i32
  }
  func.func @transform_2(%arg0: i32, %arg1: i32) -> (i32, i32) {
    %c1_i32 = arith.constant 1 : i32
    %0 = arith.muli %arg0, %c1_i32 : i32
    %1 = arith.addi %0, %arg1 : i32
    %c0_i32 = arith.constant 0 : i32
    %c0_i32_0 = arith.constant 0 : i32
    return %1, %c0_i32 : i32, i32
  }
  func.func @transform_3(%arg0: i32, %arg1: i32) -> (i32, i32, i32) {
    %c0_i32 = arith.constant 0 : i32
    %c0_i32_0 = arith.constant 0 : i32
    %c0_i32_1 = arith.constant 0 : i32
    return %arg0, %c0_i32, %c0_i32_0 : i32, i32, i32
  }
  func.func @transform_4(%arg0: i32, %arg1: i32) -> (i32, i32, i32) {
    %c0_i32 = arith.constant 0 : i32
    %c0_i32_0 = arith.constant 0 : i32
    %c0_i32_1 = arith.constant 0 : i32
    return %arg0, %c0_i32, %c0_i32_0 : i32, i32, i32
  }
}

</mosaic_0001>

<llo_original>
// kernel: tpu_custom_call.1
$region0: #{tpu_custom_call.1}
  #allocation0 [shape = 'u32[]', space=smem, size = 0x4, offset = 0x4, fixed_abs, tag = 'smem constant byte address 0x4 - core index']
  #allocation1 [shape = 'u32[144,128]{1,0:T(1,128)}', space=vmem, size = 0x12000, scoped, tag = 'internal scratch']
  #allocation2 [shape = 'f32[64,128]{1,0:T(8,128)}', space=vmem, size = 0x8000, scoped, tag = 'scratch operand']
  #allocation3 [shape = 'f32[64,128]{1,0:T(8,128)}', space=vmem, size = 0x8000, scoped, tag = 'scratch operand']
  %s0 = inlined_call_operand.hbm [shape: f32[4,128], index: 0, kind: input, shape index: {}]
  %s1 = inlined_call_operand.hbm [shape: f32[4,128], index: 1, kind: input, shape index: {}]
  %s2 = inlined_call_operand.vmem [shape: f32[4,128], index: 2, kind: input, shape index: {}]
  %s3 = inlined_call_operand.hbm [shape: f32[1,1,1], index: 3, kind: output, shape index: {0}]
  %s4 = inlined_call_operand.hbm [shape: f32[1,1,1], index: 4, kind: output, shape index: {1}]
  %5 = xla_tuple %s3, %s4
  %s6 = sld [smem:[#allocation0]]
  $region54: #{tpu_custom_call.1} parent=0
    _
  %s8 = ssub.s32 1, %s6
  %s9 = scalar_select 0, %s8, %s6
  $region1: #{tpu_custom_call.1} parent=0
    #allocation4 [shape = 'u8[32768]{0}', space=vmem, size = 0x8000, scoped, tag = 'input window, operand 0, single buffered']
    #allocation5 [shape = 's32[1]{0}', space=sflag, size = 0x4, scoped, tag = 'scoped memory for tpu_custom_call.1']
    #allocation6 [shape = 's32[1]{0}', space=sflag, size = 0x4, scoped, tag = 'scoped memory for tpu_custom_call.1']
    #allocation7 [shape = 'u8[32768]{0}', space=vmem, size = 0x8000, scoped, tag = 'input window, operand 1, single buffered']
    #allocation8 [shape = 's32[1]{0}', space=sflag, size = 0x4, scoped, tag = 'scoped memory for tpu_custom_call.1']
    #allocation9 [shape = 'u8[512]{0}', space=vmem, size = 0x400, scoped, tag = 'output window, operand 0, single buffered']
    #allocation10 [shape = 'u8[512]{0}', space=vmem, size = 0x400, scoped, tag = 'output window, operand 1, single buffered']
    #allocation11 [shape = 's32[1]{0}', space=sflag, size = 0x4, scoped, tag = 'scoped memory for tpu_custom_call.1']
    %10 = vsyncpa [#allocation5], 0
    %11 = vsyncpa [#allocation8], 0
    %12 = vsyncpa [#allocation6], 0
    %13 = vsyncpa [#allocation11], 0
    // Predicated region
    $region2: #{tpu_custom_call.1} parent=1 // pred_check
      _
    $region3: #{tpu_custom_call.1} parent=1 // pred_check_branch
      %15 = sbr.rel (0) target = $region5
    $region4: #{tpu_custom_call.1} parent=1 // pred_region
      %s16 = sadd.s32 0, 0
      %s17 = smul.u32 16, %s16
      %s18 = ssub.s32 1, %s17
      %s19 = smul.u32 64, %s18
      %s21 = ssub.s32 1024, %s19
      %22 = vsyncadd [#allocation5], %s21
      %p23 = scmp.ne.s32.totalorder 0, %s19
      %s24 = smul.addr %s17, 64
      %s25 = scalar_lea.hbm %s0, %s24
      %s26 = smul.u32 4, %s18
      %s27 = sshll.u32 [#allocation4], 4
      %s28 = int_to_ptr.vmem [resolvable:$true] %s27
      %s29 = sshll.u32 %s26, 4
      %33 = dma.hbm_to_vmem [thread:$0]  (%p23), %s25, %s29, %s28, [#allocation5], 64, 64, 4
    $region5: #{tpu_custom_call.1} parent=1 // pred_fallthru
      _
    // Predicated region
    $region6: #{tpu_custom_call.1} parent=1 // pred_check
      _
    $region7: #{tpu_custom_call.1} parent=1 // pred_check_branch
      %35 = sbr.rel (0) target = $region9
    $region8: #{tpu_custom_call.1} parent=1 // pred_region
      %s36 = sadd.s32 0, 0
      %s37 = smul.u32 16, %s36
      %s38 = ssub.s32 1, %s37
      %s39 = smul.u32 64, %s38
      %s41 = ssub.s32 1024, %s39
      %42 = vsyncadd [#allocation8], %s41
      %p43 = scmp.ne.s32.totalorder 0, %s39
      %s44 = smul.addr %s37, 64
      %s45 = scalar_lea.hbm %s1, %s44
      %s46 = smul.u32 4, %s38
      %s47 = sshll.u32 [#allocation7], 4
      %s48 = int_to_ptr.vmem [resolvable:$true] %s47
      %s49 = sshll.u32 %s46, 4
      %53 = dma.hbm_to_vmem [thread:$0]  (%p43), %s45, %s49, %s48, [#allocation8], 64, 64, 4
    $region9: #{tpu_custom_call.1} parent=1 // pred_fallthru
      _
    // Predicated region
    $region10: #{tpu_custom_call.1} parent=1 // pred_check
      _
    $region11: #{tpu_custom_call.1} parent=1 // pred_check_branch
      %55 = sbr.rel (0) target = $region13
    $region12: #{tpu_custom_call.1} parent=1 // pred_region
      %s56 = sadd.s32 0, 0
      %s57 = smul.u32 16, %s56
      %s58 = ssub.s32 1, %s57
      %s59 = smul.u32 64, %s58
      %p60 = scmp.lt.s32.totalorder %s57, 0
      %s61 = scalar_select %p60, %s57, 0
      %s62 = smul.addr %s61, 4
      %s63 = scalar_lea.vmem %s2, %s62
      %s64 = sadd.s32 0, 0
      %s65 = smul.u32 16, %s64
      %s66 = ssub.s32 1, %s65
      %s67 = smul.u32 64, %s66
    $region13: #{tpu_custom_call.1} parent=1 // pred_fallthru
      _
    // Predicated region
    $region14: #{tpu_custom_call.1} parent=1 // pred_check
      _
    $region15: #{tpu_custom_call.1} parent=1 // pred_check_branch
      %69 = sbr.rel (0) target = $region17
    $region16: #{tpu_custom_call.1} parent=1 // pred_region
      %70 = dma.done [#allocation5], 1024
    $region17: #{tpu_custom_call.1} parent=1 // pred_fallthru
      _
    // Predicated region
    $region18: #{tpu_custom_call.1} parent=1 // pred_check
      _
    $region19: #{tpu_custom_call.1} parent=1 // pred_check_branch
      %72 = sbr.rel (0) target = $region21
    $region20: #{tpu_custom_call.1} parent=1 // pred_region
      %73 = dma.done [#allocation8], 1024
    $region21: #{tpu_custom_call.1} parent=1 // pred_fallthru
      _
    %s74 = sadd.s32 0, 0
    %s75 = smul.u32 16, %s74
    %s76 = ssub.s32 1, %s75
    %s77 = smul.u32 64, %s76
    %p78 = scmp.lt.s32.totalorder %s75, 0
    %s79 = scalar_select %p78, %s75, 0
    %s80 = smul.addr %s79, 4
    %s81 = scalar_lea.vmem %s2, %s80
    %s82 = sadd.s32 0, 0
    %s83 = smul.u32 16, %s82
    %s84 = ssub.s32 1, %s83
    %s85 = smul.u32 64, %s84
    %s86 = sadd.s32 0, 0
    %s87 = smul.u32 16, %s86
    %s88 = ssub.s32 1, %s87
    %s89 = smul.u32 64, %s88
    %s90 = sadd.s32 0, 0
    %s91 = smul.u32 16, %s90
    %s92 = ssub.s32 1, %s91
    %s93 = smul.u32 64, %s92
    %p94 = scmp.lt.s32.totalorder %s91, 0
    %s95 = scalar_select %p94, %s91, 0
    %s96 = smul.addr %s95, 4
    %s97 = scalar_lea.vmem %s2, %s96
    %s98 = sadd.s32 0, 0
    %s99 = smul.u32 16, %s98
    %s100 = ssub.s32 1, %s99
    %s101 = smul.u32 64, %s100
    %p102 = scmp.eq.s32.totalorder 0, 0
    // Predicated region
    $region22: #{tpu_custom_call.1} parent=1 // pred_check
      %p103 = pneg %p102
    $region23: #{tpu_custom_call.1} parent=1 // pred_check_branch
      %105 = sbr.rel (%p103) target = $region25
    $region24: #{tpu_custom_call.1} parent=1 // pred_region
      %106 = vst [vmem:[#allocation2] sm:$0xff] 0.0
      %107 = vst [vmem:[#allocation2 + $0x8] sm:$0xff] 0.0
      %108 = vst [vmem:[#allocation2 + $0x10] sm:$0xff] 0.0
      %109 = vst [vmem:[#allocation2 + $0x18] sm:$0xff] 0.0
      %110 = vst [vmem:[#allocation2 + $0x20] sm:$0xff] 0.0
      %111 = vst [vmem:[#allocation2 + $0x28] sm:$0xff] 0.0
      %112 = vst [vmem:[#allocation2 + $0x30] sm:$0xff] 0.0
      %113 = vst [vmem:[#allocation2 + $0x38] sm:$0xff] 0.0
      %114 = vst [vmem:[#allocation3] sm:$0xff] 0.0
      %115 = vst [vmem:[#allocation3 + $0x8] sm:$0xff] 0.0
      %116 = vst [vmem:[#allocation3 + $0x10] sm:$0xff] 0.0
      %117 = vst [vmem:[#allocation3 + $0x18] sm:$0xff] 0.0
      %118 = vst [vmem:[#allocation3 + $0x20] sm:$0xff] 0.0
      %119 = vst [vmem:[#allocation3 + $0x28] sm:$0xff] 0.0
      %120 = vst [vmem:[#allocation3 + $0x30] sm:$0xff] 0.0
      %121 = vst [vmem:[#allocation3 + $0x38] sm:$0xff] 0.0
    $region25: #{tpu_custom_call.1} parent=1 // pred_fallthru
      _
    %s122 = sadd.s32 0, 0
    %s123 = smul.u32 %s122, 8192
    %v124 = vld [vmem:[#allocation4] sm:$0xff]
    %v125 = vld [vmem:[#allocation4 + $0x8] sm:$0xff]
    %v126 = vld [vmem:[#allocation4 + $0x10] sm:$0xff]
    %v127 = vld [vmem:[#allocation4 + $0x18] sm:$0xff]
    %v128 = vld [vmem:[#allocation4 + $0x20] sm:$0xff]
    %v129 = vld [vmem:[#allocation4 + $0x28] sm:$0xff]
    %v130 = vld [vmem:[#allocation4 + $0x30] sm:$0xff]
    %v131 = vld [vmem:[#allocation4 + $0x38] sm:$0xff]
    %v132 = vld [vmem:[#allocation7] sm:$0xff]
    %v133 = vld [vmem:[#allocation7 + $0x8] sm:$0xff]
    %v134 = vld [vmem:[#allocation7 + $0x10] sm:$0xff]
    %v135 = vld [vmem:[#allocation7 + $0x18] sm:$0xff]
    %v136 = vld [vmem:[#allocation7 + $0x20] sm:$0xff]
    %v137 = vld [vmem:[#allocation7 + $0x28] sm:$0xff]
    %v138 = vld [vmem:[#allocation7 + $0x30] sm:$0xff]
    %v139 = vld [vmem:[#allocation7 + $0x38] sm:$0xff]
    %v140 = vld [vmem:[%s97] sm:$0xff]
    %v141 = vld [vmem:[%s97 + $0x8] sm:$0xff]
    %v142 = vld [vmem:[%s97 + $0x10] sm:$0xff]
    %v143 = vld [vmem:[%s97 + $0x18] sm:$0xff]
    %v144 = vld [vmem:[%s97 + $0x20] sm:$0xff]
    %v145 = vld [vmem:[%s97 + $0x28] sm:$0xff]
    %v146 = vld [vmem:[%s97 + $0x30] sm:$0xff]
    %v147 = vld [vmem:[%s97 + $0x38] sm:$0xff]
    %v148 = vsub.f32 %v124, %v132
    %v149 = vsub.f32 %v125, %v133
    %v150 = vsub.f32 %v126, %v134
    %v151 = vsub.f32 %v127, %v135
    %v152 = vsub.f32 %v128, %v136
    %v153 = vsub.f32 %v129, %v137
    %v154 = vsub.f32 %v130, %v138
    %v155 = vsub.f32 %v131, %v139
    %v156 = vmul.f32 %v140, 100.0
    %v157 = vmul.f32 %v141, 100.0
    %v158 = vmul.f32 %v142, 100.0
    %v159 = vmul.f32 %v143, 100.0
    %v160 = vmul.f32 %v144, 100.0
    %v161 = vmul.f32 %v145, 100.0
    %v162 = vmul.f32 %v146, 100.0
    %v163 = vmul.f32 %v147, 100.0
    %v164 = vsub.f32 %v148, %v156
    %v165 = vsub.f32 %v149, %v157
    %v166 = vsub.f32 %v150, %v158
    %v167 = vsub.f32 %v151, %v159
    %v168 = vsub.f32 %v152, %v160
    %v169 = vsub.f32 %v153, %v161
    %v170 = vsub.f32 %v154, %v162
    %v171 = vsub.f32 %v155, %v163
    %s172 = sadd.s32 %s123, 8192
    %p173 = scmp.gt.s32.totalorder %s172, 512
    %p174 = scmp.le.s32.totalorder %s172, 512
    // Predicated region
    $region26: #{tpu_custom_call.1} parent=1 // pred_check
      %p175 = pneg %p174
    $region27: #{tpu_custom_call.1} parent=1 // pred_check_branch
      %177 = sbr.rel (%p175) target = $region29
    $region28: #{tpu_custom_call.1} parent=1 // pred_region
      %v178 = vld [vmem:[#allocation2] sm:$0xff]
      %v179 = vld [vmem:[#allocation2 + $0x8] sm:$0xff]
      %v180 = vld [vmem:[#allocation2 + $0x10] sm:$0xff]
      %v181 = vld [vmem:[#allocation2 + $0x18] sm:$0xff]
      %v182 = vld [vmem:[#allocation2 + $0x20] sm:$0xff]
      %v183 = vld [vmem:[#allocation2 + $0x28] sm:$0xff]
      %v184 = vld [vmem:[#allocation2 + $0x30] sm:$0xff]
      %v185 = vld [vmem:[#allocation2 + $0x38] sm:$0xff]
      %v186 = vadd.f32 %v124, 0.0
      %v187 = vadd.f32 %v125, 0.0
      %v188 = vadd.f32 %v126, 0.0
      %v189 = vadd.f32 %v127, 0.0
      %v190 = vadd.f32 %v128, 0.0
      %v191 = vadd.f32 %v129, 0.0
      %v192 = vadd.f32 %v130, 0.0
      %v193 = vadd.f32 %v131, 0.0
      %v194 = vadd.f32 %v178, %v186
      %v195 = vadd.f32 %v179, %v187
      %v196 = vadd.f32 %v180, %v188
      %v197 = vadd.f32 %v181, %v189
      %v198 = vadd.f32 %v182, %v190
      %v199 = vadd.f32 %v183, %v191
      %v200 = vadd.f32 %v184, %v192
      %v201 = vadd.f32 %v185, %v193
      %202 = vst [vmem:[#allocation2] sm:$0xff] %v194
      %203 = vst [vmem:[#allocation2 + $0x8] sm:$0xff] %v195
      %204 = vst [vmem:[#allocation2 + $0x10] sm:$0xff] %v196
      %205 = vst [vmem:[#allocation2 + $0x18] sm:$0xff] %v197
      %206 = vst [vmem:[#allocation2 + $0x20] sm:$0xff] %v198
      %207 = vst [vmem:[#allocation2 + $0x28] sm:$0xff] %v199
      %208 = vst [vmem:[#allocation2 + $0x30] sm:$0xff] %v200
      %209 = vst [vmem:[#allocation2 + $0x38] sm:$0xff] %v201
      %v210 = vld [vmem:[#allocation3] sm:$0xff]
      %v211 = vld [vmem:[#allocation3 + $0x8] sm:$0xff]
      %v212 = vld [vmem:[#allocation3 + $0x10] sm:$0xff]
      %v213 = vld [vmem:[#allocation3 + $0x18] sm:$0xff]
      %v214 = vld [vmem:[#allocation3 + $0x20] sm:$0xff]
      %v215 = vld [vmem:[#allocation3 + $0x28] sm:$0xff]
      %v216 = vld [vmem:[#allocation3 + $0x30] sm:$0xff]
      %v217 = vld [vmem:[#allocation3 + $0x38] sm:$0xff]
      %v218 = vmul.f32 %v164, %v164
      %v219 = vmul.f32 %v165, %v165
      %v220 = vmul.f32 %v166, %v166
      %v221 = vmul.f32 %v167, %v167
      %v222 = vmul.f32 %v168, %v168
      %v223 = vmul.f32 %v169, %v169
      %v224 = vmul.f32 %v170, %v170
      %v225 = vmul.f32 %v171, %v171
      %v226 = vadd.f32 %v218, 0.0
      %v227 = vadd.f32 %v219, 0.0
      %v228 = vadd.f32 %v220, 0.0
      %v229 = vadd.f32 %v221, 0.0
      %v230 = vadd.f32 %v222, 0.0
      %v231 = vadd.f32 %v223, 0.0
      %v232 = vadd.f32 %v224, 0.0
      %v233 = vadd.f32 %v225, 0.0
      %v234 = vadd.f32 %v210, %v226
      %v235 = vadd.f32 %v211, %v227
      %v236 = vadd.f32 %v212, %v228
      %v237 = vadd.f32 %v213, %v229
      %v238 = vadd.f32 %v214, %v230
      %v239 = vadd.f32 %v215, %v231
      %v240 = vadd.f32 %v216, %v232
      %v241 = vadd.f32 %v217, %v233
      %242 = vst [vmem:[#allocation3] sm:$0xff] %v234
      %243 = vst [vmem:[#allocation3 + $0x8] sm:$0xff] %v235
      %244 = vst [vmem:[#allocation3 + $0x10] sm:$0xff] %v236
      %245 = vst [vmem:[#allocation3 + $0x18] sm:$0xff] %v237
      %246 = vst [vmem:[#allocation3 + $0x20] sm:$0xff] %v238
      %247 = vst [vmem:[#allocation3 + $0x28] sm:$0xff] %v239
      %248 = vst [vmem:[#allocation3 + $0x30] sm:$0xff] %v240
      %249 = vst [vmem:[#allocation3 + $0x38] sm:$0xff] %v241
    $region29: #{tpu_custom_call.1} parent=1 // pred_fallthru
      _
    // Predicated region
    $region30: #{tpu_custom_call.1} parent=1 // pred_check
      %p250 = pneg %p173
    $region31: #{tpu_custom_call.1} parent=1 // pred_check_branch
      %252 = sbr.rel (%p250) target = $region33
    $region32: #{tpu_custom_call.1} parent=1 // pred_region
      %v253 = vlaneseq
      %v254 = vshrl.u32 %v253, 7
      %v255 = vadd.s32 %v254, 8
      %v256 = vadd.s32 %v254, 16
      %v257 = vadd.s32 %v254, 24
      %v258 = vadd.s32 %v254, 32
      %v259 = vadd.s32 %v254, 40
      %v260 = vadd.s32 %v254, 48
      %v261 = vadd.s32 %v254, 56
      %v262 = vlaneseq
      %v263 = vand.u32 %v262, 127
      %v264 = vmul.u32 %v254, 128
      %v265 = vmul.u32 %v255, 128
      %v266 = vmul.u32 %v256, 128
      %v267 = vmul.u32 %v257, 128
      %v268 = vmul.u32 %v258, 128
      %v269 = vmul.u32 %v259, 128
      %v270 = vmul.u32 %v260, 128
      %v271 = vmul.u32 %v261, 128
      %v272 = vstv %s123
      %v273 = vadd.s32 %v272, %v264
      %v274 = vadd.s32 %v272, %v265
      %v275 = vadd.s32 %v272, %v266
      %v276 = vadd.s32 %v272, %v267
      %v277 = vadd.s32 %v272, %v268
      %v278 = vadd.s32 %v272, %v269
      %v279 = vadd.s32 %v272, %v270
      %v280 = vadd.s32 %v272, %v271
      %v281 = vadd.s32 %v273, %v263
      %v282 = vadd.s32 %v274, %v263
      %v283 = vadd.s32 %v275, %v263
      %v284 = vadd.s32 %v276, %v263
      %v285 = vadd.s32 %v277, %v263
      %v286 = vadd.s32 %v278, %v263
      %v287 = vadd.s32 %v279, %v263
      %v288 = vadd.s32 %v280, %v263
      %vm289 = vcmp.lt.s32.totalorder %v281, 512
      %vm290 = vcmp.lt.s32.totalorder %v282, 512
      %vm291 = vcmp.lt.s32.totalorder %v283, 512
      %vm292 = vcmp.lt.s32.totalorder %v284, 512
      %vm293 = vcmp.lt.s32.totalorder %v285, 512
      %vm294 = vcmp.lt.s32.totalorder %v286, 512
      %vm295 = vcmp.lt.s32.totalorder %v287, 512
      %vm296 = vcmp.lt.s32.totalorder %v288, 512
      %v297 = vsel %vm289, %v124, 0.0
      %v298 = vsel %vm290, %v125, 0.0
      %v299 = vsel %vm291, %v126, 0.0
      %v300 = vsel %vm292, %v127, 0.0
      %v301 = vsel %vm293, %v128, 0.0
      %v302 = vsel %vm294, %v129, 0.0
      %v303 = vsel %vm295, %v130, 0.0
      %v304 = vsel %vm296, %v131, 0.0
      %v305 = vsel %vm289, %v164, 0.0
      %v306 = vsel %vm290, %v165, 0.0
      %v307 = vsel %vm291, %v166, 0.0
      %v308 = vsel %vm292, %v167, 0.0
      %v309 = vsel %vm293, %v168, 0.0
      %v310 = vsel %vm294, %v169, 0.0
      %v311 = vsel %vm295, %v170, 0.0
      %v312 = vsel %vm296, %v171, 0.0
      %v313 = vld [vmem:[#allocation2] sm:$0xff]
      %v314 = vld [vmem:[#allocation2 + $0x8] sm:$0xff]
      %v315 = vld [vmem:[#allocation2 + $0x10] sm:$0xff]
      %v316 = vld [vmem:[#allocation2 + $0x18] sm:$0xff]
      %v317 = vld [vmem:[#allocation2 + $0x20] sm:$0xff]
      %v318 = vld [vmem:[#allocation2 + $0x28] sm:$0xff]
      %v319 = vld [vmem:[#allocation2 + $0x30] sm:$0xff]
      %v320 = vld [vmem:[#allocation2 + $0x38] sm:$0xff]
      %v321 = vadd.f32 %v297, 0.0
      %v322 = vadd.f32 %v298, 0.0
      %v323 = vadd.f32 %v299, 0.0
      %v324 = vadd.f32 %v300, 0.0
      %v325 = vadd.f32 %v301, 0.0
      %v326 = vadd.f32 %v302, 0.0
      %v327 = vadd.f32 %v303, 0.0
      %v328 = vadd.f32 %v304, 0.0
      %v329 = vadd.f32 %v313, %v321
      %v330 = vadd.f32 %v314, %v322
      %v331 = vadd.f32 %v315, %v323
      %v332 = vadd.f32 %v316, %v324
      %v333 = vadd.f32 %v317, %v325
      %v334 = vadd.f32 %v318, %v326
      %v335 = vadd.f32 %v319, %v327
      %v336 = vadd.f32 %v320, %v328
      %337 = vst [vmem:[#allocation2] sm:$0xff] %v329
      %338 = vst [vmem:[#allocation2 + $0x8] sm:$0xff] %v330
      %339 = vst [vmem:[#allocation2 + $0x10] sm:$0xff] %v331
      %340 = vst [vmem:[#allocation2 + $0x18] sm:$0xff] %v332
      %341 = vst [vmem:[#allocation2 + $0x20] sm:$0xff] %v333
      %342 = vst [vmem:[#allocation2 + $0x28] sm:$0xff] %v334
      %343 = vst [vmem:[#allocation2 + $0x30] sm:$0xff] %v335
      %344 = vst [vmem:[#allocation2 + $0x38] sm:$0xff] %v336
      %v345 = vld [vmem:[#allocation3] sm:$0xff]
      %v346 = vld [vmem:[#allocation3 + $0x8] sm:$0xff]
      %v347 = vld [vmem:[#allocation3 + $0x10] sm:$0xff]
      %v348 = vld [vmem:[#allocation3 + $0x18] sm:$0xff]
      %v349 = vld [vmem:[#allocation3 + $0x20] sm:$0xff]
      %v350 = vld [vmem:[#allocation3 + $0x28] sm:$0xff]
      %v351 = vld [vmem:[#allocation3 + $0x30] sm:$0xff]
      %v352 = vld [vmem:[#allocation3 + $0x38] sm:$0xff]
      %v353 = vmul.f32 %v305, %v305
      %v354 = vmul.f32 %v306, %v306
      %v355 = vmul.f32 %v307, %v307
      %v356 = vmul.f32 %v308, %v308
      %v357 = vmul.f32 %v309, %v309
      %v358 = vmul.f32 %v310, %v310
      %v359 = vmul.f32 %v311, %v311
      %v360 = vmul.f32 %v312, %v312
      %v361 = vadd.f32 %v353, 0.0
      %v362 = vadd.f32 %v354, 0.0
      %v363 = vadd.f32 %v355, 0.0
      %v364 = vadd.f32 %v356, 0.0
      %v365 = vadd.f32 %v357, 0.0
      %v366 = vadd.f32 %v358, 0.0
      %v367 = vadd.f32 %v359, 0.0
      %v368 = vadd.f32 %v360, 0.0
      %v369 = vadd.f32 %v345, %v361
      %v370 = vadd.f32 %v346, %v362
      %v371 = vadd.f32 %v347, %v363
      %v372 = vadd.f32 %v348, %v364
      %v373 = vadd.f32 %v349, %v365
      %v374 = vadd.f32 %v350, %v366
      %v375 = vadd.f32 %v351, %v367
      %v376 = vadd.f32 %v352, %v368
      %377 = vst [vmem:[#allocation3] sm:$0xff] %v369
      %378 = vst [vmem:[#allocation3 + $0x8] sm:$0xff] %v370
      %379 = vst [vmem:[#allocation3 + $0x10] sm:$0xff] %v371
      %380 = vst [vmem:[#allocation3 + $0x18] sm:$0xff] %v372
      %381 = vst [vmem:[#allocation3 + $0x20] sm:$0xff] %v373
      %382 = vst [vmem:[#allocation3 + $0x28] sm:$0xff] %v374
      %383 = vst [vmem:[#allocation3 + $0x30] sm:$0xff] %v375
      %384 = vst [vmem:[#allocation3 + $0x38] sm:$0xff] %v376
    $region33: #{tpu_custom_call.1} parent=1 // pred_fallthru
      _
    // Predicated region
    $region34: #{tpu_custom_call.1} parent=1 // pred_check
      %p385 = pneg %p102
    $region35: #{tpu_custom_call.1} parent=1 // pred_check_branch
      %387 = sbr.rel (%p385) target = $region37
    $region36: #{tpu_custom_call.1} parent=1 // pred_region
      %v388 = vld [vmem:[#allocation2] sm:$0xff]
      %v389 = vld [vmem:[#allocation2 + $0x8] sm:$0xff]
      %v390 = vld [vmem:[#allocation2 + $0x10] sm:$0xff]
      %v391 = vld [vmem:[#allocation2 + $0x18] sm:$0xff]
      %v392 = vld [vmem:[#allocation2 + $0x20] sm:$0xff]
      %v393 = vld [vmem:[#allocation2 + $0x28] sm:$0xff]
      %v394 = vld [vmem:[#allocation2 + $0x30] sm:$0xff]
      %v395 = vld [vmem:[#allocation2 + $0x38] sm:$0xff]
      %v396 = vadd.f32 %v388, %v389
      %v397 = vadd.f32 %v396, %v390
      %v398 = vadd.f32 %v397, %v391
      %v399 = vadd.f32 %v398, %v392
      %v400 = vadd.f32 %v399, %v393
      %v401 = vadd.f32 %v400, %v394
      %v402 = vadd.f32 %v401, %v395
      %403 = vadd.xlane.f32.xlu0 %v402
      %v404 = vpop.xlane.xlu0 %403
      %v405 = vrot.slane %v404, 4
      %v406 = vadd.f32 %v404, %v405
      %v407 = vrot.slane %v406, 2
      %v408 = vadd.f32 %v406, %v407
      %v409 = vrot.slane %v408, 1
      %v410 = vadd.f32 %v408, %v409
      %s411 = vtos %v410
      %v412 = vstv %s411
      %vm413 = vcmask 0
      %414 = vst.msk [vmem:[#allocation9] sm:$0x1] %vm413, %v412
      %v415 = vld [vmem:[#allocation3] sm:$0xff]
      %v416 = vld [vmem:[#allocation3 + $0x8] sm:$0xff]
      %v417 = vld [vmem:[#allocation3 + $0x10] sm:$0xff]
      %v418 = vld [vmem:[#allocation3 + $0x18] sm:$0xff]
      %v419 = vld [vmem:[#allocation3 + $0x20] sm:$0xff]
      %v420 = vld [vmem:[#allocation3 + $0x28] sm:$0xff]
      %v421 = vld [vmem:[#allocation3 + $0x30] sm:$0xff]
      %v422 = vld [vmem:[#allocation3 + $0x38] sm:$0xff]
      %v423 = vadd.f32 %v415, %v416
      %v424 = vadd.f32 %v423, %v417
      %v425 = vadd.f32 %v424, %v418
      %v426 = vadd.f32 %v425, %v419
      %v427 = vadd.f32 %v426, %v420
      %v428 = vadd.f32 %v427, %v421
      %v429 = vadd.f32 %v428, %v422
      %430 = vadd.xlane.f32.xlu0 %v429
      %v431 = vpop.xlane.xlu0 %430
      %v432 = vrot.slane %v431, 4
      %v433 = vadd.f32 %v431, %v432
      %v434 = vrot.slane %v433, 2
      %v435 = vadd.f32 %v433, %v434
      %v436 = vrot.slane %v435, 1
      %v437 = vadd.f32 %v435, %v436
      %s438 = vtos %v437
      %v439 = vstv %s438
      %440 = vst.msk [vmem:[#allocation10] sm:$0x1] %vm413, %v439
    $region37: #{tpu_custom_call.1} parent=1 // pred_fallthru
      _
    // Predicated region
    $region38: #{tpu_custom_call.1} parent=1 // pred_check
      _
    $region39: #{tpu_custom_call.1} parent=1 // pred_check_branch
      %442 = sbr.rel (0) target = $region41
    $region40: #{tpu_custom_call.1} parent=1 // pred_region
      %s444 = ssub.s32 16, 16
      %445 = vsyncadd [#allocation6], %s444
      %s447 = sshll.u32 [#allocation9], 4
      %s448 = int_to_ptr.vmem [resolvable:$true] %s447
      %450 = dma.vmem_to_hbm [thread:$0]  %s448, 16, %s3, [#allocation6]
    $region41: #{tpu_custom_call.1} parent=1 // pred_fallthru
      _
    // Predicated region
    $region42: #{tpu_custom_call.1} parent=1 // pred_check
      _
    $region43: #{tpu_custom_call.1} parent=1 // pred_check_branch
      %452 = sbr.rel (0) target = $region45
    $region44: #{tpu_custom_call.1} parent=1 // pred_region
      %s454 = ssub.s32 16, 16
      %455 = vsyncadd [#allocation11], %s454
      %s457 = sshll.u32 [#allocation10], 4
      %s458 = int_to_ptr.vmem [resolvable:$true] %s457
      %460 = dma.vmem_to_hbm [thread:$0]  %s458, 16, %s4, [#allocation11]
    $region45: #{tpu_custom_call.1} parent=1 // pred_fallthru
      _
    // Predicated region
    $region46: #{tpu_custom_call.1} parent=1 // pred_check
      _
    $region47: #{tpu_custom_call.1} parent=1 // pred_check_branch
      %462 = sbr.rel (0) target = $region49
    $region48: #{tpu_custom_call.1} parent=1 // pred_region
      %463 = dma.done [#allocation6], 16
    $region49: #{tpu_custom_call.1} parent=1 // pred_fallthru
      _
    // Predicated region
    $region50: #{tpu_custom_call.1} parent=1 // pred_check
      _
    $region51: #{tpu_custom_call.1} parent=1 // pred_check_branch
      %465 = sbr.rel (0) target = $region53
    $region52: #{tpu_custom_call.1} parent=1 // pred_region
      %466 = dma.done [#allocation11], 16
    $region53: #{tpu_custom_call.1} parent=1 // pred_fallthru
      _
    %467 = vsyncpa [#allocation5], 1
    %468 = vsyncpa [#allocation8], 1
    %469 = vsyncpa [#allocation6], 1
    %470 = vsyncpa [#allocation11], 1

</llo_original>
